<compile_context>
chip_gen: v7x
topology: tpu7x:2x2x1
jax: 0.10.0
libtpu: 0.0.40
codegen_flags: <defaults>
</compile_context>

<pallas_src>
import functools

import jax
import jax.numpy as jnp
from jax import lax
from jax.experimental import pallas as pl
from jax.experimental.pallas import tpu as pltpu


# --------------------------------------------------------------------------- #
# Kernel                                                                      #
# --------------------------------------------------------------------------- #
def _sae_step(x_ref, w_enc_ref, b_enc_ref, inv_ref, w_dec_ref, b_dec_ref,
              out_ref, c_ref, acc_ref):
    """One (row-tile i, dict-tile j) grid step of the SAE forward.

    x_ref     : (TM, Dp)  input activations row tile (compute dtype)
    w_enc_ref : (Dp, TC)  encoder weight dict tile   (compute dtype)
    b_enc_ref : (1,  TC)  encoder bias dict tile     (f32)
    inv_ref   : (1,  TC)  per-dict-element inverse decoder norms (f32)
    w_dec_ref : (TC, Dp)  raw (un-normalized) decoder weight dict tile
    b_dec_ref : (1,  Dp)  decoder bias (resident, constant block index, f32)
    out_ref   : (TM, Dp)  reconstruction x_hat
    c_ref     : (TM, TC)  dictionary codes (post-ReLU) for this dict tile
    acc_ref   : (TM, Dp)  f32 accumulator (out_ref itself when out dtype is f32)
    """
    j = pl.program_id(1)

    @pl.when(j == 0)
    def _():
        acc_ref[...] = jnp.zeros_like(acc_ref)

    # Encoder tile: c_j = relu(x @ W_enc[:, j-tile] + b_enc[j-tile]).
    # Operands stay in their stored (bf16) dtype; f32 MXU accumulation.
    pre = jnp.dot(x_ref[...], w_enc_ref[...],
                  preferred_element_type=jnp.float32)
    c = jnp.maximum(pre + b_enc_ref[...], 0.0)          # f32
    c_ref[...] = c.astype(c_ref.dtype)

    # Decoder with unit-norm dictionary elements: instead of materializing a
    # normalized copy of W_dec, scale c by the per-element inverse norm (one
    # (TM, TC) VPU multiply, free under the MXU) and stream stored W_dec.
    c_scaled = (c * inv_ref[...]).astype(w_dec_ref.dtype)
    acc_ref[...] += jnp.dot(c_scaled, w_dec_ref[...],
                            preferred_element_type=jnp.float32)

    @pl.when(j == pl.num_programs(1) - 1)
    def _():
        out_ref[...] = (acc_ref[...] + b_dec_ref[...]).astype(out_ref.dtype)


def _sae_kernel_direct(x_ref, w_enc_ref, b_enc_ref, inv_ref, w_dec_ref,
                       b_dec_ref, out_ref, c_ref):
    # f32 output: accumulate straight into the resident output block.
    _sae_step(x_ref, w_enc_ref, b_enc_ref, inv_ref, w_dec_ref, b_dec_ref,
              out_ref, c_ref, out_ref)


def _sae_kernel_scratch(x_ref, w_enc_ref, b_enc_ref, inv_ref, w_dec_ref,
                        b_dec_ref, out_ref, c_ref, acc_ref):
    _sae_step(x_ref, w_enc_ref, b_enc_ref, inv_ref, w_dec_ref, b_dec_ref,
              out_ref, c_ref, acc_ref)


# --------------------------------------------------------------------------- #
# Tiling helpers                                                              #
# --------------------------------------------------------------------------- #
def _round_up(x: int, m: int) -> int:
    return (x + m - 1) // m * m


@functools.lru_cache(maxsize=1)
def _vmem_capacity_bytes() -> int:
    """Per-TensorCore VMEM: 128 MiB on v4/v5e/v6e; assume 64 MiB (v7x) otherwise."""
    try:
        kind = jax.devices()[0].device_kind.lower()
    except Exception:
        kind = ""
    if any(tag in kind for tag in ("v4", "v5", "v6")):
        return 128 * 1024 * 1024
    return 64 * 1024 * 1024


def _tile_divisors(total: int, granule: int):
    """Multiples of `granule` that evenly divide `total`, descending."""
    return sorted((t for t in range(granule, total + 1, granule)
                   if total % t == 0), reverse=True)


def _choose_tiles(M, d_pad, c_pad, x_bytes, w_bytes, c_bytes, out_bytes,
                  row_tile, c_tile, sublane, direct_acc):
    cap = _vmem_capacity_bytes()
    # Scoped VMEM limit per generation recommendation: ~96 MiB on v4/v5e/v6e,
    # 48 MiB when only 64 MiB is physically available (v7x / unknown).
    vmem_limit = min(cap * 3 // 4, 100 * 1024 * 1024)
    budget = int(cap * 0.6)          # usable tile budget, leaves compiler headroom

    # Dict tile: largest multiple of 128 that divides c_pad and is <= c_tile.
    tc_cands = _tile_divisors(c_pad, 128)
    tc = next((t for t in tc_cands if t <= max(c_tile, 128)), tc_cands[-1])

    # Row tile: cap by M and make sure the parallel M axis has >= 2 tiles so
    # both v7x TensorCores get work.
    tm = min(_round_up(row_tile, sublane), _round_up(M, sublane))
    if M >= 2 * sublane:
        tm = min(tm, _round_up((M + 1) // 2, sublane))
    tm = max(tm, sublane)

    def usage(tm_, tc_):
        wts = 2 * 2 * d_pad * tc_ * w_bytes            # W_enc + W_dec, double-buffered
        xio = 2 * tm_ * d_pad * (x_bytes + out_bytes)  # x in + x_hat out
        cio = 2 * tm_ * tc_ * c_bytes                  # c out
        acc = 0 if direct_acc else tm_ * d_pad * 4
        small = 2 * (2 * 8 * tc_ * 4 + 8 * d_pad * 4)  # biases / inv-norms (sublane-padded)
        return wts + xio + cio + acc + small

    # Shrink the dict tile first (weight restreaming per pass is independent of
    # tc), then the row tile, until the working set fits the VMEM budget.
    while usage(tm, tc) > budget:
        smaller_tc = next((t for t in tc_cands if t < tc), None)
        if smaller_tc is not None and tc > 256:
            tc = smaller_tc
        elif tm > sublane:
            tm = max(sublane, _round_up(tm // 2, sublane))
        elif smaller_tc is not None:
            tc = smaller_tc
        else:
            break
    return tm, tc, int(vmem_limit)


# --------------------------------------------------------------------------- #
# Weight preparation (hoisted out of the per-call path)                       #
# --------------------------------------------------------------------------- #
def prepare_sae_params(params, compute_dtype=jnp.bfloat16):
    """One-time SAE weight preparation.

    - Computes the per-dict-element inverse L2 norm of the decoder (replaces
      materializing a normalized copy of W_dec every forward).
    - Casts weights to the MXU compute dtype (bf16 by default); biases and the
      inverse norms stay f32.
    - Zero-pads everything to lane-aligned shapes (D, C -> multiples of 128).

    Raw param layout (transposed torch layouts the kernel consumes directly):
      w_enc [D, C] (= encoder[0].weight.T), b_enc [C],
      w_dec [C, D] (= decoder.weight.T),    b_dec [D].
    """
    w_enc, b_enc = params["w_enc"], params["b_enc"]
    w_dec, b_dec = params["w_dec"], params["b_dec"]
    D, C = w_enc.shape
    d_pad = _round_up(D, 128)
    c_pad = _round_up(C, 128)

    # torch F.normalize(decoder.weight, dim=0): per dict element, clamp the L2
    # norm to >= 1e-12 (== rsqrt(max(sum_sq, 1e-24))).
    w32 = w_dec.astype(jnp.float32)
    inv = lax.rsqrt(jnp.maximum(jnp.sum(w32 * w32, axis=-1), 1e-24))

    return {
        "w_enc": jnp.pad(w_enc.astype(compute_dtype),
                         ((0, d_pad - D), (0, c_pad - C))),
        "b_enc": jnp.pad(b_enc.astype(jnp.float32).reshape(1, C),
                         ((0, 0), (0, c_pad - C))),
        "inv_norm": jnp.pad(inv.reshape(1, C), ((0, 0), (0, c_pad - C))),
        "w_dec": jnp.pad(w_dec.astype(compute_dtype),
                         ((0, c_pad - C), (0, d_pad - D))),
        "b_dec": jnp.pad(b_dec.astype(jnp.float32).reshape(1, D),
                         ((0, 0), (0, d_pad - D))),
        "d_model": D,
        "n_dict": C,
    }


# --------------------------------------------------------------------------- #
# Forward                                                                     #
# --------------------------------------------------------------------------- #
@functools.partial(jax.jit, static_argnames=("D", "C", "tm", "tc", "vmem_limit"))
def _sae_forward_impl(x, w_enc_p, b_enc_p, inv_p, w_dec_p, b_dec_p,
                      *, D, C, tm, tc, vmem_limit):
    B, S, _ = x.shape
    M = B * S
    d_pad, c_pad = w_enc_p.shape
    m_pad = _round_up(M, tm)
    compute_dtype = w_enc_p.dtype
    out_dtype = x.dtype
    direct_acc = jnp.dtype(out_dtype) == jnp.dtype(jnp.float32)

    # Per-call activation padding (zero padding is exact: padded dict slots give
    # c == 0 and padded D columns contribute nothing; sliced off below).
    x2 = jnp.pad(x.reshape(M, D).astype(compute_dtype),
                 ((0, m_pad - M), (0, d_pad - D)))

    grid = (m_pad // tm, c_pad // tc)
    out_shapes = (
        jax.ShapeDtypeStruct((m_pad, d_pad), out_dtype),       # x_hat
        jax.ShapeDtypeStruct((m_pad, c_pad), compute_dtype),   # c (bf16 when compute is bf16)
    )
    kernel = _sae_kernel_direct if direct_acc else _sae_kernel_scratch
    scratch = [] if direct_acc else [pltpu.VMEM((tm, d_pad), jnp.float32)]

    x_hat_p, c_p = pl.pallas_call(
        kernel,
        out_shape=out_shapes,
        grid_spec=pltpu.PrefetchScalarGridSpec(
            num_scalar_prefetch=0,
            grid=grid,
            in_specs=[
                pl.BlockSpec((tm, d_pad), lambda i, j: (i, 0)),  # x row tile (resident over j)
                pl.BlockSpec((d_pad, tc), lambda i, j: (0, j)),  # W_enc dict tile
                pl.BlockSpec((1, tc), lambda i, j: (0, j)),      # b_enc dict tile (f32)
                pl.BlockSpec((1, tc), lambda i, j: (0, j)),      # inverse decoder norms (f32)
                pl.BlockSpec((tc, d_pad), lambda i, j: (j, 0)),  # W_dec dict tile (raw)
                pl.BlockSpec((1, d_pad), lambda i, j: (0, 0)),   # b_dec (resident)
            ],
            out_specs=[
                pl.BlockSpec((tm, d_pad), lambda i, j: (i, 0)),  # x_hat (accumulated over j)
                pl.BlockSpec((tm, tc), lambda i, j: (i, j)),     # c
            ],
            scratch_shapes=scratch,
        ),
        compiler_params=pltpu.CompilerParams(
            # M axis parallel (shards across v7x's 2 TCs); C axis is the
            # decoder reduction -> arbitrary, last.
            dimension_semantics=("parallel", "arbitrary"),
            vmem_limit_bytes=vmem_limit,
        ),
    )(x2, w_enc_p, b_enc_p, inv_p, w_dec_p, b_dec_p)

    x_hat = x_hat_p[:M, :D].reshape(B, S, D)
    c = c_p[:M, :C].reshape(B, S, C)
    return x_hat, c


def sae_forward(x, prep, *, row_tile=512, c_tile=1024):
    """Run one SAE over activations x of shape [batch, pos, d_model].

    `prep` is the output of `prepare_sae_params`.  Returns
    (x_hat [batch, pos, d_model] in x.dtype, c [batch, pos, n_dict] in the
    compute dtype).
    """
    D, C = prep["d_model"], prep["n_dict"]
    assert x.shape[-1] == D
    B, S, _ = x.shape
    M = B * S
    d_pad, c_pad = prep["w_enc"].shape
    compute_dtype = prep["w_enc"].dtype

    sublane = max(8, 32 // jnp.dtype(compute_dtype).itemsize)  # 8 f32 / 16 bf16
    x_bytes = w_bytes = c_bytes = jnp.dtype(compute_dtype).itemsize
    out_bytes = jnp.dtype(x.dtype).itemsize
    direct_acc = jnp.dtype(x.dtype) == jnp.dtype(jnp.float32)

    tm, tc, vmem_limit = _choose_tiles(M, d_pad, c_pad, x_bytes, w_bytes,
                                       c_bytes, out_bytes, row_tile, c_tile,
                                       sublane, direct_acc)
    return _sae_forward_impl(x, prep["w_enc"], prep["b_enc"], prep["inv_norm"],
                             prep["w_dec"], prep["b_dec"],
                             D=D, C=C, tm=tm, tc=tc, vmem_limit=vmem_limit)


def sae_transformer_forward_with_orig_acts(orig_acts, saes_prepared,
                                           sae_positions, **tile_kwargs):
    """Equivalent of SAETransformer.forward(tokens, sae_positions, orig_acts=...).

    Returns (None, new_acts) where new_acts[pos] = dict(input, c, output),
    mirroring SAEActs.  Logits are None on the orig_acts path.
    """
    new_acts = {}
    for pos in sae_positions:
        prep = saes_prepared[pos.replace(".", "-")]
        x = orig_acts[pos]
        x_hat, c = sae_forward(x, prep, **tile_kwargs)
        new_acts[pos] = {"input": x, "c": c, "output": x_hat}
    return None, new_acts


# --------------------------------------------------------------------------- #
# Parameter init + references (for the self-test)                             #
# --------------------------------------------------------------------------- #
def init_sae_params(key, input_size, n_dict_components, dtype=jnp.float32):
    """Deterministic SAE parameter init (mirrors shapes of e2e_sae.SAE)."""
    k1, k2, k3, k4 = jax.random.split(key, 4)
    D, C = input_size, n_dict_components
    w_enc = jax.random.normal(k1, (D, C), dtype) * (1.0 / jnp.sqrt(D))
    b_enc = jax.random.normal(k2, (C,), dtype) * 0.01
    # init_decoder_orthogonal=True -> orthonormal rows of decoder.weight.T
    a = jax.random.normal(k3, (C, D), jnp.float32)
    q, _ = jnp.linalg.qr(a.T)                       # (D, min(D,C)) orthonormal cols
    w_dec = jnp.zeros((C, D), jnp.float32).at[: q.shape[1], :].set(q.T)
    if C > D:
        extra = jax.random.normal(k4, (C - D, D), jnp.float32) * (1.0 / jnp.sqrt(D))
        w_dec = w_dec.at[D:, :].set(extra)
    return {"w_enc": w_enc, "b_enc": b_enc,
            "w_dec": w_dec.astype(dtype), "b_dec": jnp.zeros((D,), dtype)}


def _reference_sae(x, p):
    """Plain-JAX f32 reference of the e2e_sae SAE forward."""
    B, S, D = x.shape
    x2 = x.reshape(-1, D).astype(jnp.float32)
    c = jnp.maximum(x2 @ p["w_enc"].astype(jnp.float32)
                    + p["b_enc"].astype(jnp.float32), 0.0)
    w_dec = p["w_dec"].astype(jnp.float32)
    w_dec_n = w_dec / jnp.maximum(
        jnp.linalg.norm(w_dec, axis=-1, keepdims=True), 1e-12)
    x_hat = c @ w_dec_n + p["b_dec"].astype(jnp.float32)
    return x_hat.reshape(B, S, D), c.reshape(B, S, -1)


def _reference_sae_mixed(x, p, compute_dtype):
    """Mixed-precision reference matching the kernel's bf16-operand / f32-acc math."""
    B, S, D = x.shape
    x2 = x.reshape(-1, D).astype(compute_dtype)
    pre = jnp.dot(x2, p["w_enc"].astype(compute_dtype),
                  preferred_element_type=jnp.float32)
    c = jnp.maximum(pre + p["b_enc"].astype(jnp.float32), 0.0)
    w32 = p["w_dec"].astype(jnp.float32)
    inv = 1.0 / jnp.maximum(jnp.linalg.norm(w32, axis=-1, keepdims=True), 1e-12)
    c_s = (c * inv.T).astype(compute_dtype)
    x_hat = jnp.dot(c_s, p["w_dec"].astype(compute_dtype),
                    preferred_element_type=jnp.float32) + p["b_dec"].astype(jnp.float32)
    return x_hat.reshape(B, S, D), c.reshape(B, S, -1)


# --------------------------------------------------------------------------- #
# Self-test                                                                   #
# --------------------------------------------------------------------------- #
if __name__ == "__main__":
    key = jax.random.PRNGKey(0)

    # ---- Test 1: f32 compute, small shapes (exercises padding + direct acc). --
    batch, pos, d_model = 2, 8, 32
    n_dict = int(2.0 * d_model)   # 64
    raw_sae_positions = ["blocks.0.hook_resid_post", "blocks.1.hook_resid_post"]

    k_acts, k_params = jax.random.split(key)
    act_keys = jax.random.split(k_acts, len(raw_sae_positions))
    param_keys = jax.random.split(k_params, len(raw_sae_positions))

    orig_acts = {
        name: jax.random.normal(ak, (batch, pos, d_model), jnp.float32)
        for name, ak in zip(raw_sae_positions, act_keys)
    }
    saes_raw = {
        name.replace(".", "-"): init_sae_params(pk, d_model, n_dict)
        for name, pk in zip(raw_sae_positions, param_keys)
    }
    saes_prep_f32 = {k: prepare_sae_params(v, compute_dtype=jnp.float32)
                     for k, v in saes_raw.items()}

    new_logits, new_acts = sae_transformer_forward_with_orig_acts(
        orig_acts, saes_prep_f32, raw_sae_positions)

    for name in raw_sae_positions:
        out = jax.block_until_ready(new_acts[name]["output"])
        c = jax.block_until_ready(new_acts[name]["c"])
        ref_out, ref_c = _reference_sae(orig_acts[name],
                                        saes_raw[name.replace(".", "-")])
        assert out.shape == (batch, pos, d_model)
        assert c.shape == (batch, pos, n_dict)
        assert jnp.allclose(out, ref_out, atol=1e-4, rtol=1e-4)
        assert jnp.allclose(c, ref_c, atol=1e-4, rtol=1e-4)
    assert new_logits is None  # orig_acts path returns no logits

    # ---- Test 2: f32, multi-step 2-D grid (row x dict tiles) + ragged M. -----
    b2, s2, d2 = 2, 23, 96          # M = 46 (not a tile multiple), D padded to 128
    c2_dict = int(3.0 * d2)         # 288 -> padded to 384
    kx, kp = jax.random.split(jax.random.PRNGKey(1))
    x_big = jax.random.normal(kx, (b2, s2, d2), jnp.float32)
    p_big = init_sae_params(kp, d2, c2_dict)
    prep_big_f32 = prepare_sae_params(p_big, compute_dtype=jnp.float32)
    xh, cc = sae_forward(x_big, prep_big_f32, row_tile=16, c_tile=128)
    xh = jax.block_until_ready(xh)
    cc = jax.block_until_ready(cc)
    ref_xh, ref_cc = _reference_sae(x_big, p_big)
    assert xh.shape == (b2, s2, d2) and cc.shape == (b2, s2, c2_dict)
    assert jnp.allclose(xh, ref_xh, atol=1e-4, rtol=1e-4)
    assert jnp.allclose(cc, ref_cc, atol=1e-4, rtol=1e-4)

    # ---- Test 3: bf16 compute + bf16 activations (scratch-accumulator path). --
    prep_big_bf16 = prepare_sae_params(p_big, compute_dtype=jnp.bfloat16)
    x_bf16 = x_big.astype(jnp.bfloat16)
    xh16, cc16 = sae_forward(x_bf16, prep_big_bf16)
    xh16 = jax.block_until_ready(xh16)
    cc16 = jax.block_until_ready(cc16)
    ref_xh16, ref_cc16 = _reference_sae_mixed(x_bf16, p_big, jnp.bfloat16)
    assert xh16.dtype == jnp.bfloat16 and cc16.dtype == jnp.bfloat16
    assert jnp.allclose(xh16.astype(jnp.float32), ref_xh16, atol=3e-2, rtol=3e-2)
    assert jnp.allclose(cc16.astype(jnp.float32), ref_cc16, atol=3e-2, rtol=3e-2)

    print("KERNEL_OK")
</pallas_src>

<mosaic_0001>
module attributes {stable_mosaic.version = 11 : i64} {
  func.func @_sae_kernel_direct(%arg0: i32, %arg1: i32, %arg2: memref<8x128xf32, #tpu.memory_space<vmem>>, %arg3: memref<128x128xf32, #tpu.memory_space<vmem>>, %arg4: memref<1x128xf32, #tpu.memory_space<vmem>>, %arg5: memref<1x128xf32, #tpu.memory_space<vmem>>, %arg6: memref<128x128xf32, #tpu.memory_space<vmem>>, %arg7: memref<1x128xf32, #tpu.memory_space<vmem>>, %arg8: memref<8x128xf32, #tpu.memory_space<vmem>>, %arg9: memref<8x128xf32, #tpu.memory_space<vmem>>) attributes {dimension_semantics = [#tpu.dimension_semantics<parallel>, #tpu.dimension_semantics<arbitrary>], iteration_bounds = array<i64: 2, 1>, scalar_prefetch = 0 : i64, scratch_operands = 0 : i64, tpu.core_type = #tpu.core_type<tc>, window_params = [{transform_indices = @transform_0, window_bounds = array<i64: 8, 128>}, {transform_indices = @transform_1, window_bounds = array<i64: 128, 128>}, {transform_indices = @transform_2, window_bounds = array<i64: 1, 128>}, {transform_indices = @transform_3, window_bounds = array<i64: 1, 128>}, {transform_indices = @transform_4, window_bounds = array<i64: 128, 128>}, {pipeline_mode = #tpu.pipeline_mode<synchronous>, transform_indices = @transform_5, window_bounds = array<i64: 1, 128>}, {transform_indices = @transform_6, window_bounds = array<i64: 8, 128>}, {transform_indices = @transform_7, window_bounds = array<i64: 8, 128>}]} {
    %c0_i32 = arith.constant 0 : i32
    %0 = arith.cmpi eq, %arg1, %c0_i32 : i32
    %1 = arith.extui %0 : i1 to i32
    %c0_i32_0 = arith.constant 0 : i32
    %2 = arith.cmpi ne, %1, %c0_i32_0 : i32
    scf.if %2 {
      %cst_20 = arith.constant 0.000000e+00 : f32
      %23 = vector.broadcast %cst_20 : f32 to vector<8x128xf32>
      %c0_21 = arith.constant 0 : index
      %c0_22 = arith.constant 0 : index
      %24 = vector.load %arg8[%c0_21, %c0_22] : memref<8x128xf32, #tpu.memory_space<vmem>>, vector<8x128xf32>
      tpu.vector_store %arg8[%c0_21, %c0_22], %23 {strides = array<i32>} : memref<8x128xf32, #tpu.memory_space<vmem>>, vector<8x128xf32>,
    } else {
    }
    %c0 = arith.constant 0 : index
    %c0_1 = arith.constant 0 : index
    %3 = vector.load %arg2[%c0, %c0_1] : memref<8x128xf32, #tpu.memory_space<vmem>>, vector<8x128xf32>
    %c0_2 = arith.constant 0 : index
    %c0_3 = arith.constant 0 : index
    %4 = vector.load %arg3[%c0_2, %c0_3] : memref<128x128xf32, #tpu.memory_space<vmem>>, vector<128x128xf32>
    %cst = arith.constant dense<0.000000e+00> : vector<8x128xf32>
    %5 = tpu.matmul %3, %4, %cst {dimension_numbers = #tpu.dot_dimension_numbers<[1], [0], [0], [1], [0, 0, 1, 1], [], []>} : vector<8x128xf32>, vector<128x128xf32>, vector<8x128xf32> -> vector<8x128xf32>
    %c0_4 = arith.constant 0 : index
    %c0_5 = arith.constant 0 : index
    %6 = vector.load %arg4[%c0_4, %c0_5] : memref<1x128xf32, #tpu.memory_space<vmem>>, vector<1x128xf32>
    %7 = vector.broadcast %6 : vector<1x128xf32> to vector<8x128xf32>
    %8 = arith.addf %5, %7 : vector<8x128xf32>
    %cst_6 = arith.constant 0.000000e+00 : f32
    %9 = vector.broadcast %cst_6 : f32 to vector<8x128xf32>
    %10 = arith.maximumf %8, %9 : vector<8x128xf32>
    %c0_7 = arith.constant 0 : index
    %c0_8 = arith.constant 0 : index
    %11 = vector.load %arg9[%c0_7, %c0_8] : memref<8x128xf32, #tpu.memory_space<vmem>>, vector<8x128xf32>
    tpu.vector_store %arg9[%c0_7, %c0_8], %10 {strides = array<i32>} : memref<8x128xf32, #tpu.memory_space<vmem>>, vector<8x128xf32>,
    %c0_9 = arith.constant 0 : index
    %c0_10 = arith.constant 0 : index
    %12 = vector.load %arg5[%c0_9, %c0_10] : memref<1x128xf32, #tpu.memory_space<vmem>>, vector<1x128xf32>
    %13 = vector.broadcast %12 : vector<1x128xf32> to vector<8x128xf32>
    %14 = arith.mulf %10, %13 : vector<8x128xf32>
    %c0_11 = arith.constant 0 : index
    %c0_12 = arith.constant 0 : index
    %15 = vector.load %arg8[%c0_11, %c0_12] : memref<8x128xf32, #tpu.memory_space<vmem>>, vector<8x128xf32>
    %c0_13 = arith.constant 0 : index
    %c0_14 = arith.constant 0 : index
    %16 = vector.load %arg6[%c0_13, %c0_14] : memref<128x128xf32, #tpu.memory_space<vmem>>, vector<128x128xf32>
    %cst_15 = arith.constant dense<0.000000e+00> : vector<8x128xf32>
    %17 = tpu.matmul %14, %16, %cst_15 {dimension_numbers = #tpu.dot_dimension_numbers<[1], [0], [0], [1], [0, 0, 1, 1], [], []>} : vector<8x128xf32>, vector<128x128xf32>, vector<8x128xf32> -> vector<8x128xf32>
    %18 = arith.addf %15, %17 : vector<8x128xf32>
    %c0_16 = arith.constant 0 : index
    %c0_17 = arith.constant 0 : index
    %19 = vector.load %arg8[%c0_16, %c0_17] : memref<8x128xf32, #tpu.memory_space<vmem>>, vector<8x128xf32>
    tpu.vector_store %arg8[%c0_16, %c0_17], %18 {strides = array<i32>} : memref<8x128xf32, #tpu.memory_space<vmem>>, vector<8x128xf32>,
    %c0_i32_18 = arith.constant 0 : i32
    %20 = arith.cmpi eq, %arg1, %c0_i32_18 : i32
    %21 = arith.extui %20 : i1 to i32
    %c0_i32_19 = arith.constant 0 : i32
    %22 = arith.cmpi ne, %21, %c0_i32_19 : i32
    scf.if %22 {
      %c0_20 = arith.constant 0 : index
      %c0_21 = arith.constant 0 : index
      %23 = vector.load %arg8[%c0_20, %c0_21] : memref<8x128xf32, #tpu.memory_space<vmem>>, vector<8x128xf32>
      %c0_22 = arith.constant 0 : index
      %c0_23 = arith.constant 0 : index
      %24 = vector.load %arg7[%c0_22, %c0_23] : memref<1x128xf32, #tpu.memory_space<vmem>>, vector<1x128xf32>
      %25 = vector.broadcast %24 : vector<1x128xf32> to vector<8x128xf32>
      %26 = arith.addf %23, %25 : vector<8x128xf32>
      %c0_24 = arith.constant 0 : index
      %c0_25 = arith.constant 0 : index
      %27 = vector.load %arg8[%c0_24, %c0_25] : memref<8x128xf32, #tpu.memory_space<vmem>>, vector<8x128xf32>
      tpu.vector_store %arg8[%c0_24, %c0_25], %26 {strides = array<i32>} : memref<8x128xf32, #tpu.memory_space<vmem>>, vector<8x128xf32>,
    } else {
    }
    return
  }
  func.func @transform_0(%arg0: i32, %arg1: i32) -> (i32, i32) {
    %c0_i32 = arith.constant 0 : i32
    %c0_i32_0 = arith.constant 0 : i32
    return %arg0, %c0_i32 : i32, i32
  }
  func.func @transform_1(%arg0: i32, %arg1: i32) -> (i32, i32) {
    %c0_i32 = arith.constant 0 : i32
    %c0_i32_0 = arith.constant 0 : i32
    return %c0_i32, %arg1 : i32, i32
  }
  func.func @transform_2(%arg0: i32, %arg1: i32) -> (i32, i32) {
    %c0_i32 = arith.constant 0 : i32
    %c0_i32_0 = arith.constant 0 : i32
    return %c0_i32, %arg1 : i32, i32
  }
  func.func @transform_3(%arg0: i32, %arg1: i32) -> (i32, i32) {
    %c0_i32 = arith.constant 0 : i32
    %c0_i32_0 = arith.constant 0 : i32
    return %c0_i32, %arg1 : i32, i32
  }
  func.func @transform_4(%arg0: i32, %arg1: i32) -> (i32, i32) {
    %c0_i32 = arith.constant 0 : i32
    %c0_i32_0 = arith.constant 0 : i32
    return %arg1, %c0_i32 : i32, i32
  }
  func.func @transform_5(%arg0: i32, %arg1: i32) -> (i32, i32) {
    %c0_i32 = arith.constant 0 : i32
    %c0_i32_0 = arith.constant 0 : i32
    %c0_i32_1 = arith.constant 0 : i32
    return %c0_i32, %c0_i32_0 : i32, i32
  }
  func.func @transform_6(%arg0: i32, %arg1: i32) -> (i32, i32) {
    %c0_i32 = arith.constant 0 : i32
    %c0_i32_0 = arith.constant 0 : i32
    return %arg0, %c0_i32 : i32, i32
  }
  func.func @transform_7(%arg0: i32, %arg1: i32) -> (i32, i32) {
    %c0_i32 = arith.constant 0 : i32
    return %arg0, %arg1 : i32, i32
  }
}

</mosaic_0001>

<llo_original>
// kernel: _sae_forward_impl.1
$region0: #{_sae_forward_impl.1}
  #allocation0 [shape = 'u32[]', space=smem, size = 0x4, offset = 0x4, fixed_abs, tag = 'smem constant byte address 0x4 - core index']
  #allocation1 [shape = 'u32[144,128]{1,0:T(1,128)}', space=vmem, size = 0x12000, scoped, tag = 'internal scratch']
  %s0 = inlined_call_operand.vmem [shape: f32[16,128], index: 0, kind: input, shape index: {}]
  %s1 = inlined_call_operand.hbm [shape: f32[128,128], index: 1, kind: input, shape index: {}]
  %s2 = inlined_call_operand.vmem [shape: f32[1,128], index: 2, kind: input, shape index: {}]
  %s3 = inlined_call_operand.vmem [shape: f32[1,128], index: 3, kind: input, shape index: {}]
  %s4 = inlined_call_operand.hbm [shape: f32[128,128], index: 4, kind: input, shape index: {}]
  %s5 = inlined_call_operand.vmem [shape: f32[1,128], index: 5, kind: input, shape index: {}]
  %s6 = inlined_call_operand.vmem [shape: f32[16,128], index: 6, kind: output, shape index: {0}]
  %s7 = inlined_call_operand.vmem [shape: f32[16,128], index: 7, kind: output, shape index: {1}]
  %8 = xla_tuple %s6, %s7
  %s9 = sld [smem:[#allocation0]]
  $region81: #{_sae_forward_impl.1} parent=0
    _
  %s11 = ssub.s32 1, %s9
  %s12 = scalar_select 0, %s11, %s9
  $region1: #{_sae_forward_impl.1} parent=0
    #allocation2 [shape = 'u8[65536]{0}', space=vmem, size = 0x10000, scoped, tag = 'input window, operand 1, single buffered']
    #allocation3 [shape = 's32[2]{0}', space=sflag, size = 0x8, scoped, tag = 'scoped memory for _sae_forward_impl.1']
    #allocation4 [shape = 'u8[65536]{0}', space=vmem, size = 0x10000, scoped, tag = 'input window, operand 4, single buffered']
    #allocation5 [shape = 's32[1]{0}', space=sflag, size = 0x4, scoped, tag = 'scoped memory for _sae_forward_impl.1']
    %13 = vsyncpa [#allocation3], 0
    %14 = vsyncpa [#allocation5], 0
    loop: start=0, step=1, limit=4
    $region2: #{_sae_forward_impl.1} parent=1 // loop_pre_header
      _
    $region3: #{_sae_forward_impl.1} parent=1 // loop_header
      %s16 = sphi 0, %s20
      %p17 = scmp.ge.s32.totalorder %s16, 4
      %s23 = sphi 0, %s35
      %s24 = sphi 0, %s31
      %s25 = sphi 0, %s23
      %s26 = sphi 0, %s24
      %s27 = sphi 0, %s25
      %s28 = sphi 0, %s26
      %s38 = sphi 0, %s40
      %s41 = sphi 0, %s38
      %s42 = sphi 0, %s41
      %s58 = sphi 0, %s42
      %s64 = sphi 0, %s66
      %s67 = sphi 0, %s64
      %s68 = sphi 0, %s67
      %s84 = sphi 0, %s68
      %s90 = sphi 0, %s92
      %s93 = sphi 0, %s90
      %s94 = sphi 0, %s93
      %s110 = sphi 0, %s94
      %s116 = sphi 0, %s118
      %s119 = sphi 0, %s116
      %s120 = sphi 0, %s119
      %s136 = sphi 0, %s120
      %s142 = sphi 0, %s144
      %s145 = sphi 0, %s142
      %s146 = sphi 0, %s145
      %s162 = sphi 0, %s146
      %s166 = sphi 0, %s166
      %s168 = sphi 0, %s166
      %s169 = sphi 0, %s168
      %s183 = sphi 0, %s169
      %s189 = sphi 0, %s191
      %s192 = sphi 0, %s189
      %s193 = sphi 0, %s192
      %s209 = sphi 0, %s193
      %s217 = sphi 0, %s219
      %s220 = sphi 0, %s217
      %s221 = sphi 0, %s220
      %s237 = sphi 0, %s221
    $region4: #{_sae_forward_impl.1} parent=1 // loop_header_branch
      %19 = sbr.rel (%p17) target = $region8
    $region5: #{_sae_forward_impl.1} parent=1 // loop_body
      %s21 = ssub.s32 %s16, 1
      %s22 = ssub.s32 %s16, 2
      %s29 = sadd.s32 1, %s24
      %p30 = scmp.ge.s32.totalorder %s29, 1
      %s31 = scalar_select %p30, 0, %s29
      %s32 = sadd.s32 1, %s23
      %s33 = scalar_select %p30, %s32, %s23
      %p34 = scmp.ge.s32.totalorder %s33, 2
      %s35 = scalar_select %p34, 0, %s33
      %s36 = ssub.s32 %s23, %s35
      %p37 = scmp.eq.s32.totalorder %s36, 0
      %s39 = sadd.s32 %s38, 1
      %s40 = scalar_select %p37, %s38, %s39
      %p43 = pneg %p37
      %p44 = scmp.eq.s32.totalorder %s16, 1
      %p45 = por %p43, %p44
      %p46 = scmp.ne.s32.totalorder %s38, %s41
      %p47 = scmp.eq.s32.totalorder %s16, 0
      %p48 = por %p46, %p47
      %p49 = scmp.ne.s32.totalorder %s38, %s41
      %p50 = scmp.eq.s32.totalorder %s21, 1
      %p51 = por %p49, %p50
      %p52 = scmp.ne.s32.totalorder %s41, %s42
      %p53 = scmp.eq.s32.totalorder %s21, 0
      %p54 = por %p52, %p53
      %p55 = scmp.ne.s32.totalorder %s41, %s42
      %p56 = scmp.eq.s32.totalorder %s22, 1
      %p57 = por %p55, %p56
      %p59 = scmp.ne.s32.totalorder %s42, %s58
      %p60 = scmp.eq.s32.totalorder %s22, 0
      %p61 = por %p59, %p60
      %s62 = ssub.s32 %s24, %s31
      %p63 = scmp.eq.s32.totalorder %s62, 0
      %s65 = sadd.s32 %s64, 1
      %s66 = scalar_select %p63, %s64, %s65
      %p69 = pneg %p63
      %p70 = scmp.eq.s32.totalorder %s16, 1
      %p71 = por %p69, %p70
      %p72 = scmp.ne.s32.totalorder %s64, %s67
      %p73 = scmp.eq.s32.totalorder %s16, 0
      %p74 = por %p72, %p73
      %p75 = scmp.ne.s32.totalorder %s64, %s67
      %p76 = scmp.eq.s32.totalorder %s21, 1
      %p77 = por %p75, %p76
      %p78 = scmp.ne.s32.totalorder %s67, %s68
      %p79 = scmp.eq.s32.totalorder %s21, 0
      %p80 = por %p78, %p79
      %p81 = scmp.ne.s32.totalorder %s67, %s68
      %p82 = scmp.eq.s32.totalorder %s22, 1
      %p83 = por %p81, %p82
      %p85 = scmp.ne.s32.totalorder %s68, %s84
      %p86 = scmp.eq.s32.totalorder %s22, 0
      %p87 = por %p85, %p86
      %s88 = ssub.s32 %s24, %s31
      %p89 = scmp.eq.s32.totalorder %s88, 0
      %s91 = sadd.s32 %s90, 1
      %s92 = scalar_select %p89, %s90, %s91
      %p95 = pneg %p89
      %p96 = scmp.eq.s32.totalorder %s16, 1
      %p97 = por %p95, %p96
      %p98 = scmp.ne.s32.totalorder %s90, %s93
      %p99 = scmp.eq.s32.totalorder %s16, 0
      %p100 = por %p98, %p99
      %p101 = scmp.ne.s32.totalorder %s90, %s93
      %p102 = scmp.eq.s32.totalorder %s21, 1
      %p103 = por %p101, %p102
      %p104 = scmp.ne.s32.totalorder %s93, %s94
      %p105 = scmp.eq.s32.totalorder %s21, 0
      %p106 = por %p104, %p105
      %p107 = scmp.ne.s32.totalorder %s93, %s94
      %p108 = scmp.eq.s32.totalorder %s22, 1
      %p109 = por %p107, %p108
      %p111 = scmp.ne.s32.totalorder %s94, %s110
      %p112 = scmp.eq.s32.totalorder %s22, 0
      %p113 = por %p111, %p112
      %s114 = ssub.s32 %s24, %s31
      %p115 = scmp.eq.s32.totalorder %s114, 0
      %s117 = sadd.s32 %s116, 1
      %s118 = scalar_select %p115, %s116, %s117
      %p121 = pneg %p115
      %p122 = scmp.eq.s32.totalorder %s16, 1
      %p123 = por %p121, %p122
      %p124 = scmp.ne.s32.totalorder %s116, %s119
      %p125 = scmp.eq.s32.totalorder %s16, 0
      %p126 = por %p124, %p125
      %p127 = scmp.ne.s32.totalorder %s116, %s119
      %p128 = scmp.eq.s32.totalorder %s21, 1
      %p129 = por %p127, %p128
      %p130 = scmp.ne.s32.totalorder %s119, %s120
      %p131 = scmp.eq.s32.totalorder %s21, 0
      %p132 = por %p130, %p131
      %p133 = scmp.ne.s32.totalorder %s119, %s120
      %p134 = scmp.eq.s32.totalorder %s22, 1
      %p135 = por %p133, %p134
      %p137 = scmp.ne.s32.totalorder %s120, %s136
      %p138 = scmp.eq.s32.totalorder %s22, 0
      %p139 = por %p137, %p138
      %s140 = ssub.s32 %s24, %s31
      %p141 = scmp.eq.s32.totalorder %s140, 0
      %s143 = sadd.s32 %s142, 1
      %s144 = scalar_select %p141, %s142, %s143
      %p147 = pneg %p141
      %p148 = scmp.eq.s32.totalorder %s16, 1
      %p149 = por %p147, %p148
      %p150 = scmp.ne.s32.totalorder %s142, %s145
      %p151 = scmp.eq.s32.totalorder %s16, 0
      %p152 = por %p150, %p151
      %p153 = scmp.ne.s32.totalorder %s142, %s145
      %p154 = scmp.eq.s32.totalorder %s21, 1
      %p155 = por %p153, %p154
      %p156 = scmp.ne.s32.totalorder %s145, %s146
      %p157 = scmp.eq.s32.totalorder %s21, 0
      %p158 = por %p156, %p157
      %p159 = scmp.ne.s32.totalorder %s145, %s146
      %p160 = scmp.eq.s32.totalorder %s22, 1
      %p161 = por %p159, %p160
      %p163 = scmp.ne.s32.totalorder %s146, %s162
      %p164 = scmp.eq.s32.totalorder %s22, 0
      %p165 = por %p163, %p164
      %s167 = sadd.s32 %s166, 1
      %p170 = scmp.eq.s32.totalorder %s16, 1
      %p171 = scmp.ne.s32.totalorder %s166, %s168
      %p172 = scmp.eq.s32.totalorder %s16, 0
      %p173 = por %p171, %p172
      %p174 = scmp.ne.s32.totalorder %s166, %s168
      %p175 = scmp.eq.s32.totalorder %s21, 1
      %p176 = por %p174, %p175
      %p177 = scmp.ne.s32.totalorder %s168, %s169
      %p178 = scmp.eq.s32.totalorder %s21, 0
      %p179 = por %p177, %p178
      %p180 = scmp.ne.s32.totalorder %s168, %s169
      %p181 = scmp.eq.s32.totalorder %s22, 1
      %p182 = por %p180, %p181
      %p184 = scmp.ne.s32.totalorder %s169, %s183
      %p185 = scmp.eq.s32.totalorder %s22, 0
      %p186 = por %p184, %p185
      %s187 = ssub.s32 %s23, %s35
      %p188 = scmp.eq.s32.totalorder %s187, 0
      %s190 = sadd.s32 %s189, 1
      %s191 = scalar_select %p188, %s189, %s190
      %p194 = pneg %p188
      %p195 = scmp.eq.s32.totalorder %s16, 1
      %p196 = por %p194, %p195
      %p197 = scmp.ne.s32.totalorder %s189, %s192
      %p198 = scmp.eq.s32.totalorder %s16, 0
      %p199 = por %p197, %p198
      %p200 = scmp.ne.s32.totalorder %s189, %s192
      %p201 = scmp.eq.s32.totalorder %s21, 1
      %p202 = por %p200, %p201
      %p203 = scmp.ne.s32.totalorder %s192, %s193
      %p204 = scmp.eq.s32.totalorder %s21, 0
      %p205 = por %p203, %p204
      %p206 = scmp.ne.s32.totalorder %s192, %s193
      %p207 = scmp.eq.s32.totalorder %s22, 1
      %p208 = por %p206, %p207
      %p210 = scmp.ne.s32.totalorder %s193, %s209
      %p211 = scmp.eq.s32.totalorder %s22, 0
      %p212 = por %p210, %p211
      %s213 = ssub.s32 %s23, %s35
      %s214 = ssub.s32 %s24, %s31
      %s215 = sor.u32 %s213, %s214
      %p216 = scmp.eq.s32.totalorder %s215, 0
      %s218 = sadd.s32 %s217, 1
      %s219 = scalar_select %p216, %s217, %s218
      %p222 = pneg %p216
      %p223 = scmp.eq.s32.totalorder %s16, 1
      %p224 = por %p222, %p223
      %p225 = scmp.ne.s32.totalorder %s217, %s220
      %p226 = scmp.eq.s32.totalorder %s16, 0
      %p227 = por %p225, %p226
      %p228 = scmp.ne.s32.totalorder %s217, %s220
      %p229 = scmp.eq.s32.totalorder %s21, 1
      %p230 = por %p228, %p229
      %p231 = scmp.ne.s32.totalorder %s220, %s221
      %p232 = scmp.eq.s32.totalorder %s21, 0
      %p233 = por %p231, %p232
      %p234 = scmp.ne.s32.totalorder %s220, %s221
      %p235 = scmp.eq.s32.totalorder %s22, 1
      %p236 = por %p234, %p235
      %p238 = scmp.ne.s32.totalorder %s221, %s237
      %p239 = scmp.eq.s32.totalorder %s22, 0
      %p240 = por %p238, %p239
      %p241 = scmp.le.s32.totalorder 1, %s16
      %p242 = scmp.lt.s32.totalorder %s16, 3
      %p243 = pnand %p241, %p242
      %p244 = pneg %p243
      // Predicated region
      $region9: #{_sae_forward_impl.1} parent=5 // pred_check
        _
      $region10: #{_sae_forward_impl.1} parent=5 // pred_check_branch
        %246 = sbr.rel (%p243) target = $region12
      $region11: #{_sae_forward_impl.1} parent=5 // pred_region
        %s247 = ssub.s32 %s16, 1
        // Predicated region
        $region13: #{_sae_forward_impl.1} parent=11 // pred_check
          %p248 = pneg %p80
        $region14: #{_sae_forward_impl.1} parent=11 // pred_check_branch
          %250 = sbr.rel (%p248) target = $region16
        $region15: #{_sae_forward_impl.1} parent=11 // pred_region
          %s252 = ssub.s32 2048, 2048
          %253 = vsyncadd [#allocation3], %s252
          %s254 = smul.addr %s26, 128
          %s255 = scalar_lea.hbm %s1, %s254
          %s256 = sshll.u32 [#allocation2], 4
          %s257 = int_to_ptr.vmem [resolvable:$true] %s256
          %262 = dma.hbm_to_vmem [thread:$0]  %s255, 2048, %s257, [#allocation3], 128, 128, 8
        $region16: #{_sae_forward_impl.1} parent=11 // pred_fallthru
          _
        // Predicated region
        $region17: #{_sae_forward_impl.1} parent=11 // pred_check
          %p263 = pneg %p106
        $region18: #{_sae_forward_impl.1} parent=11 // pred_check_branch
          %265 = sbr.rel (%p263) target = $region20
        $region19: #{_sae_forward_impl.1} parent=11 // pred_region
          %p266 = scmp.lt.s32.totalorder %s26, 0
          %s267 = scalar_select %p266, %s26, 0
          %s268 = scalar_lea.vmem %s2, %s267
        $region20: #{_sae_forward_impl.1} parent=11 // pred_fallthru
          _
        // Predicated region
        $region21: #{_sae_forward_impl.1} parent=11 // pred_check
          %p269 = pneg %p132
        $region22: #{_sae_forward_impl.1} parent=11 // pred_check_branch
          %271 = sbr.rel (%p269) target = $region24
        $region23: #{_sae_forward_impl.1} parent=11 // pred_region
          %p272 = scmp.lt.s32.totalorder %s26, 0
          %s273 = scalar_select %p272, %s26, 0
          %s274 = scalar_lea.vmem %s3, %s273
        $region24: #{_sae_forward_impl.1} parent=11 // pred_fallthru
          _
        // Predicated region
        $region25: #{_sae_forward_impl.1} parent=11 // pred_check
          %p275 = pneg %p158
        $region26: #{_sae_forward_impl.1} parent=11 // pred_check_branch
          %277 = sbr.rel (%p275) target = $region28
        $region27: #{_sae_forward_impl.1} parent=11 // pred_region
          %s278 = smul.u32 16, %s26
          %s280 = ssub.s32 2048, 2048
          %281 = vsyncadd [#allocation5], %s280
          %s282 = smul.addr %s278, 128
          %s283 = scalar_lea.hbm %s4, %s282
          %s284 = sshll.u32 [#allocation4], 4
          %s285 = int_to_ptr.vmem [resolvable:$true] %s284
          %290 = dma.hbm_to_vmem [thread:$0]  %s283, 2048, %s285, [#allocation5], 128, 128, 8
        $region28: #{_sae_forward_impl.1} parent=11 // pred_fallthru
          _
        // Predicated region
        $region29: #{_sae_forward_impl.1} parent=11 // pred_check
          %p291 = pneg %p179
        $region30: #{_sae_forward_impl.1} parent=11 // pred_check_branch
          %293 = sbr.rel (%p291) target = $region32
        $region31: #{_sae_forward_impl.1} parent=11 // pred_region
          _
        $region32: #{_sae_forward_impl.1} parent=11 // pred_fallthru
          _
      $region12: #{_sae_forward_impl.1} parent=5 // pred_fallthru
        _
      %p294 = scmp.lt.s32.totalorder %s16, 2
      // Predicated region
      $region33: #{_sae_forward_impl.1} parent=5 // pred_check
        %p295 = pneg %p294
      $region34: #{_sae_forward_impl.1} parent=5 // pred_check_branch
        %297 = sbr.rel (%p295) target = $region36
      $region35: #{_sae_forward_impl.1} parent=5 // pred_region
        // Predicated region
        $region37: #{_sae_forward_impl.1} parent=35 // pred_check
          %p298 = pneg %p48
        $region38: #{_sae_forward_impl.1} parent=35 // pred_check_branch
          %300 = sbr.rel (%p298) target = $region40
        $region39: #{_sae_forward_impl.1} parent=35 // pred_region
          %p301 = scmp.lt.s32.totalorder %s23, 1
          %s302 = scalar_select %p301, %s23, 1
          %s303 = smul.addr %s302, 8
          %s304 = scalar_lea.vmem %s0, %s303
        $region40: #{_sae_forward_impl.1} parent=35 // pred_fallthru
          _
      $region36: #{_sae_forward_impl.1} parent=5 // pred_fallthru
        _
      %p305 = scmp.le.s32.totalorder 1, %s16
      %p306 = scmp.lt.s32.totalorder %s16, 3
      %p307 = pnand %p305, %p306
      %p308 = pneg %p307
      // Predicated region
      $region41: #{_sae_forward_impl.1} parent=5 // pred_check
        _
      $region42: #{_sae_forward_impl.1} parent=5 // pred_check_branch
        %310 = sbr.rel (%p307) target = $region44
      $region43: #{_sae_forward_impl.1} parent=5 // pred_region
        %s311 = ssub.s32 %s16, 1
        // Predicated region
        $region45: #{_sae_forward_impl.1} parent=43 // pred_check
          %p312 = pneg %p80
        $region46: #{_sae_forward_impl.1} parent=43 // pred_check_branch
          %314 = sbr.rel (%p312) target = $region48
        $region47: #{_sae_forward_impl.1} parent=43 // pred_region
          %315 = dma.done [#allocation3], 2048
        $region48: #{_sae_forward_impl.1} parent=43 // pred_fallthru
          _
        // Predicated region
        $region49: #{_sae_forward_impl.1} parent=43 // pred_check
          %p316 = pneg %p158
        $region50: #{_sae_forward_impl.1} parent=43 // pred_check_branch
          %318 = sbr.rel (%p316) target = $region52
        $region51: #{_sae_forward_impl.1} parent=43 // pred_region
          %319 = dma.done [#allocation5], 2048
        $region52: #{_sae_forward_impl.1} parent=43 // pred_fallthru
          _
        %p320 = scmp.lt.s32.totalorder %s25, 1
        %s321 = scalar_select %p320, %s25, 1
        %s322 = smul.addr %s321, 8
        %s323 = scalar_lea.vmem %s0, %s322
        %p324 = pneg %p54
        %p325 = pneg %p51
        %p326 = pneg %p80
        %p327 = pneg %p77
        %p328 = scmp.lt.s32.totalorder %s26, 0
        %s329 = scalar_select %p328, %s26, 0
        %s330 = scalar_lea.vmem %s2, %s329
        %p331 = pneg %p106
        %p332 = pneg %p103
        %p333 = scmp.lt.s32.totalorder %s26, 0
        %s334 = scalar_select %p333, %s26, 0
        %s335 = scalar_lea.vmem %s3, %s334
        %p336 = pneg %p132
        %p337 = pneg %p129
        %p338 = pneg %p158
        %p339 = pneg %p155
        %p340 = pneg %p179
        %p341 = pneg %p176
        %p342 = pneg %p205
        %p343 = pneg %p202
        %p344 = scmp.lt.s32.totalorder %s25, 1
        %s345 = scalar_select %p344, %s25, 1
        %s346 = smul.addr %s345, 8
        %s347 = scalar_lea.vmem %s6, %s346
        %p348 = pneg %p233
        %p349 = pneg %p230
        %p350 = scmp.lt.s32.totalorder %s25, 1
        %s351 = scalar_select %p350, %s25, 1
        %p352 = scmp.lt.s32.totalorder %s26, 0
        %s353 = scalar_select %p352, %s26, 0
        %s354 = sadd.s32 %s353, %s351
        %s355 = smul.addr %s354, 8
        %s356 = scalar_lea.vmem %s7, %s355
        %p357 = scmp.lt.s32.totalorder %s25, 1
        %s358 = scalar_select %p357, %s25, 1
        %s359 = smul.addr %s358, 8
        %s360 = scalar_lea.vmem %s0, %s359
        %p361 = scmp.lt.s32.totalorder %s26, 0
        %s362 = scalar_select %p361, %s26, 0
        %s363 = scalar_lea.vmem %s2, %s362
        %p364 = scmp.lt.s32.totalorder %s26, 0
        %s365 = scalar_select %p364, %s26, 0
        %s366 = scalar_lea.vmem %s3, %s365
        %s367 = smul.u32 16, %s26
        %p368 = scmp.lt.s32.totalorder %s25, 1
        %s369 = scalar_select %p368, %s25, 1
        %s370 = smul.addr %s369, 8
        %s371 = scalar_lea.vmem %s6, %s370
        %p372 = scmp.lt.s32.totalorder %s25, 1
        %s373 = scalar_select %p372, %s25, 1
        %p374 = scmp.lt.s32.totalorder %s26, 0
        %s375 = scalar_select %p374, %s26, 0
        %s376 = sadd.s32 %s375, %s373
        %s377 = smul.addr %s376, 8
        %s378 = scalar_lea.vmem %s7, %s377
        %p379 = scmp.eq.s32.totalorder %s26, 0
        // Predicated region
        $region53: #{_sae_forward_impl.1} parent=43 // pred_check
          %p380 = pneg %p379
        $region54: #{_sae_forward_impl.1} parent=43 // pred_check_branch
          %382 = sbr.rel (%p380) target = $region56
        $region55: #{_sae_forward_impl.1} parent=43 // pred_region
          %383 = vst [vmem:[%s371] sm:$0xff] 0.0
        $region56: #{_sae_forward_impl.1} parent=43 // pred_fallthru
          _
        %v384 = vld [vmem:[%s360] sm:$0xff]
        %v385 = vld [vmem:[#allocation2] sm:$0xff]
        %v386 = vld [vmem:[#allocation2 + $0x8] sm:$0xff]
        %v387 = vld [vmem:[#allocation2 + $0x10] sm:$0xff]
        %v388 = vld [vmem:[#allocation2 + $0x18] sm:$0xff]
        %v389 = vld [vmem:[#allocation2 + $0x20] sm:$0xff]
        %v390 = vld [vmem:[#allocation2 + $0x28] sm:$0xff]
        %v391 = vld [vmem:[#allocation2 + $0x30] sm:$0xff]
        %v392 = vld [vmem:[#allocation2 + $0x38] sm:$0xff]
        %v393 = vld [vmem:[#allocation2 + $0x40] sm:$0xff]
        %v394 = vld [vmem:[#allocation2 + $0x48] sm:$0xff]
        %v395 = vld [vmem:[#allocation2 + $0x50] sm:$0xff]
        %v396 = vld [vmem:[#allocation2 + $0x58] sm:$0xff]
        %v397 = vld [vmem:[#allocation2 + $0x60] sm:$0xff]
        %v398 = vld [vmem:[#allocation2 + $0x68] sm:$0xff]
        %v399 = vld [vmem:[#allocation2 + $0x70] sm:$0xff]
        %v400 = vld [vmem:[#allocation2 + $0x78] sm:$0xff]
        %v401 = vld [vmem:[%s363] sm:$0x1]
        %v403 = vlaneseq
        %v404 = vshrl.u32 %v403, 7
        %v405 = vsub.s32 0, %v404
        %v406 = vrot.slane %v401, %v405
        %408 = vmatprep.subr.mxu0 0.0
        %409 = vmatpush1.msra.mxu0 %v385
        %410 = vmatprep.subr.mxu0 0.0
        %411 = vmatpush1.msra.mxu0 %v386
        %412 = vmatprep.subr.mxu0 0.0
        %413 = vmatpush1.msra.mxu0 %v387
        %414 = vmatprep.subr.mxu0 0.0
        %415 = vmatpush1.msra.mxu0 %v388
        %416 = vmatprep.subr.mxu0 0.0
        %417 = vmatpush1.msra.mxu0 %v389
        %418 = vmatprep.subr.mxu0 0.0
        %419 = vmatpush1.msra.mxu0 %v390
        %420 = vmatprep.subr.mxu0 0.0
        %421 = vmatpush1.msra.mxu0 %v391
        %422 = vmatprep.subr.mxu0 0.0
        %423 = vmatpush1.msra.mxu0 %v392
        %424 = vmatprep.subr.mxu0 0.0
        %425 = vmatpush1.msra.mxu0 %v393
        %426 = vmatprep.subr.mxu0 0.0
        %427 = vmatpush1.msra.mxu0 %v394
        %428 = vmatprep.subr.mxu0 0.0
        %429 = vmatpush1.msra.mxu0 %v395
        %430 = vmatprep.subr.mxu0 0.0
        %431 = vmatpush1.msra.mxu0 %v396
        %432 = vmatprep.subr.mxu0 0.0
        %433 = vmatpush1.msra.mxu0 %v397
        %434 = vmatprep.subr.mxu0 0.0
        %435 = vmatpush1.msra.mxu0 %v398
        %436 = vmatprep.subr.mxu0 0.0
        %437 = vmatpush1.msra.mxu0 %v399
        %438 = vmatprep.subr.mxu0 0.0
        %439 = vmatpush1.msra.mxu0 %v400
        %440 = vmatprep.subr.mxu0 0.0
        %441 = vmatpush1.msra.mxu0 0.0
        %442 = vmatprep.subr.mxu0 0.0
        %443 = vmatpush1.msra.mxu0 0.0
        %444 = vmatprep.subr.mxu0 0.0
        %445 = vmatpush1.msra.mxu0 0.0
        %446 = vmatprep.subr.mxu0 0.0
        %447 = vmatpush1.msra.mxu0 0.0
        %448 = vmatprep.subr.mxu0 0.0
        %449 = vmatpush1.msra.mxu0 0.0
        %450 = vmatprep.subr.mxu0 0.0
        %451 = vmatpush1.msra.mxu0 0.0
        %452 = vmatprep.subr.mxu0 0.0
        %453 = vmatpush1.msra.mxu0 0.0
        %454 = vmatprep.subr.mxu0 0.0
        %455 = vmatpush1.msra.mxu0 0.0
        %456 = vmatprep.subr.mxu0 0.0
        %457 = vmatpush1.msra.mxu0 0.0
        %458 = vmatprep.subr.mxu0 0.0
        %459 = vmatpush1.msra.mxu0 0.0
        %460 = vmatprep.subr.mxu0 0.0
        %461 = vmatpush1.msra.mxu0 0.0
        %462 = vmatprep.subr.mxu0 0.0
        %463 = vmatpush1.msra.mxu0 0.0
        %464 = vmatprep.subr.mxu0 0.0
        %465 = vmatpush1.msra.mxu0 0.0
        %466 = vmatprep.subr.mxu0 0.0
        %467 = vmatpush1.msra.mxu0 0.0
        %468 = vmatprep.subr.mxu0 0.0
        %469 = vmatpush1.msra.mxu0 0.0
        %470 = vmatprep.subr.mxu0 0.0
        %471 = vmatpush1.msra.mxu0 0.0
        %472 = vmatprep.mubr.f32.mxu0 0.0
        %473 = vmatmul.mubr.f32.gmra.mrb[0].mxu0 %v384
        %v474 = vpop.f32.mrb[0].mxu0
        %v475 = vadd.f32 %v406, %v474
        %v476 = vpop.f32.mrb[0].mxu0
        %477 = vdwg.mxu0
        %v478 = vmax.f32 %v475, 0.0
        %479 = vst [vmem:[%s378] sm:$0xff] %v478
        %v480 = vld [vmem:[%s366] sm:$0x1]
        %v482 = vlaneseq
        %v483 = vshrl.u32 %v482, 7
        %v484 = vsub.s32 0, %v483
        %v485 = vrot.slane %v480, %v484
        %v487 = vmul.f32 %v478, %v485
        %v488 = vld [vmem:[%s371] sm:$0xff]
        %v489 = vld [vmem:[#allocation4] sm:$0xff]
        %v490 = vld [vmem:[#allocation4 + $0x8] sm:$0xff]
        %v491 = vld [vmem:[#allocation4 + $0x10] sm:$0xff]
        %v492 = vld [vmem:[#allocation4 + $0x18] sm:$0xff]
        %v493 = vld [vmem:[#allocation4 + $0x20] sm:$0xff]
        %v494 = vld [vmem:[#allocation4 + $0x28] sm:$0xff]
        %v495 = vld [vmem:[#allocation4 + $0x30] sm:$0xff]
        %v496 = vld [vmem:[#allocation4 + $0x38] sm:$0xff]
        %v497 = vld [vmem:[#allocation4 + $0x40] sm:$0xff]
        %v498 = vld [vmem:[#allocation4 + $0x48] sm:$0xff]
        %v499 = vld [vmem:[#allocation4 + $0x50] sm:$0xff]
        %v500 = vld [vmem:[#allocation4 + $0x58] sm:$0xff]
        %v501 = vld [vmem:[#allocation4 + $0x60] sm:$0xff]
        %v502 = vld [vmem:[#allocation4 + $0x68] sm:$0xff]
        %v503 = vld [vmem:[#allocation4 + $0x70] sm:$0xff]
        %v504 = vld [vmem:[#allocation4 + $0x78] sm:$0xff]
        %505 = vmatprep.subr.mxu0 0.0
        %506 = vmatpush1.msra.mxu0 %v489
        %507 = vmatprep.subr.mxu0 0.0
        %508 = vmatpush1.msra.mxu0 %v490
        %509 = vmatprep.subr.mxu0 0.0
        %510 = vmatpush1.msra.mxu0 %v491
        %511 = vmatprep.subr.mxu0 0.0
        %512 = vmatpush1.msra.mxu0 %v492
        %513 = vmatprep.subr.mxu0 0.0
        %514 = vmatpush1.msra.mxu0 %v493
        %515 = vmatprep.subr.mxu0 0.0
        %516 = vmatpush1.msra.mxu0 %v494
        %517 = vmatprep.subr.mxu0 0.0
        %518 = vmatpush1.msra.mxu0 %v495
        %519 = vmatprep.subr.mxu0 0.0
        %520 = vmatpush1.msra.mxu0 %v496
        %521 = vmatprep.subr.mxu0 0.0
        %522 = vmatpush1.msra.mxu0 %v497
        %523 = vmatprep.subr.mxu0 0.0
        %524 = vmatpush1.msra.mxu0 %v498
        %525 = vmatprep.subr.mxu0 0.0
        %526 = vmatpush1.msra.mxu0 %v499
        %527 = vmatprep.subr.mxu0 0.0
        %528 = vmatpush1.msra.mxu0 %v500
        %529 = vmatprep.subr.mxu0 0.0
        %530 = vmatpush1.msra.mxu0 %v501
        %531 = vmatprep.subr.mxu0 0.0
        %532 = vmatpush1.msra.mxu0 %v502
        %533 = vmatprep.subr.mxu0 0.0
        %534 = vmatpush1.msra.mxu0 %v503
        %535 = vmatprep.subr.mxu0 0.0
        %536 = vmatpush1.msra.mxu0 %v504
        %537 = vmatprep.subr.mxu0 0.0
        %538 = vmatpush1.msra.mxu0 0.0
        %539 = vmatprep.subr.mxu0 0.0
        %540 = vmatpush1.msra.mxu0 0.0
        %541 = vmatprep.subr.mxu0 0.0
        %542 = vmatpush1.msra.mxu0 0.0
        %543 = vmatprep.subr.mxu0 0.0
        %544 = vmatpush1.msra.mxu0 0.0
        %545 = vmatprep.subr.mxu0 0.0
        %546 = vmatpush1.msra.mxu0 0.0
        %547 = vmatprep.subr.mxu0 0.0
        %548 = vmatpush1.msra.mxu0 0.0
        %549 = vmatprep.subr.mxu0 0.0
        %550 = vmatpush1.msra.mxu0 0.0
        %551 = vmatprep.subr.mxu0 0.0
        %552 = vmatpush1.msra.mxu0 0.0
        %553 = vmatprep.subr.mxu0 0.0
        %554 = vmatpush1.msra.mxu0 0.0
        %555 = vmatprep.subr.mxu0 0.0
        %556 = vmatpush1.msra.mxu0 0.0
        %557 = vmatprep.subr.mxu0 0.0
        %558 = vmatpush1.msra.mxu0 0.0
        %559 = vmatprep.subr.mxu0 0.0
        %560 = vmatpush1.msra.mxu0 0.0
        %561 = vmatprep.subr.mxu0 0.0
        %562 = vmatpush1.msra.mxu0 0.0
        %563 = vmatprep.subr.mxu0 0.0
        %564 = vmatpush1.msra.mxu0 0.0
        %565 = vmatprep.subr.mxu0 0.0
        %566 = vmatpush1.msra.mxu0 0.0
        %567 = vmatprep.subr.mxu0 0.0
        %568 = vmatpush1.msra.mxu0 0.0
        %569 = vmatprep.mubr.f32.mxu0 0.0
        %570 = vmatmul.mubr.f32.gmra.mrb[0].mxu0 %v487
        %v571 = vpop.f32.mrb[0].mxu0
        %v572 = vadd.f32 0.0, %v571
        %v573 = vpop.f32.mrb[0].mxu0
        %574 = vdwg.mxu0
        %v575 = vadd.f32 %v488, %v572
        %576 = vst [vmem:[%s371] sm:$0xff] %v575
        // Predicated region
        $region57: #{_sae_forward_impl.1} parent=43 // pred_check
          %p577 = pneg %p379
        $region58: #{_sae_forward_impl.1} parent=43 // pred_check_branch
          %579 = sbr.rel (%p577) target = $region60
        $region59: #{_sae_forward_impl.1} parent=43 // pred_region
          %v580 = vld [vmem:[%s371] sm:$0xff]
          %v581 = vld [vmem:[%s5] sm:$0x1]
          %v583 = vlaneseq
          %v584 = vshrl.u32 %v583, 7
          %v585 = vsub.s32 0, %v584
          %v586 = vrot.slane %v581, %v585
          %v588 = vadd.f32 %v580, %v586
          %589 = vst [vmem:[%s371] sm:$0xff] %v588
        $region60: #{_sae_forward_impl.1} parent=43 // pred_fallthru
          _
        %p590 = scmp.lt.s32.totalorder %s25, 1
        %s591 = scalar_select %p590, %s25, 1
        %s592 = smul.addr %s591, 8
        %s593 = scalar_lea.vmem %s6, %s592
        %p594 = scmp.lt.s32.totalorder %s25, 1
        %s595 = scalar_select %p594, %s25, 1
        %p596 = scmp.lt.s32.totalorder %s26, 0
        %s597 = scalar_select %p596, %s26, 0
        %s598 = sadd.s32 %s597, %s595
        %s599 = smul.addr %s598, 8
        %s600 = scalar_lea.vmem %s7, %s599
        // Predicated region
        $region61: #{_sae_forward_impl.1} parent=43 // pred_check
          %p601 = pneg %p202
        $region62: #{_sae_forward_impl.1} parent=43 // pred_check_branch
          %603 = sbr.rel (%p601) target = $region64
        $region63: #{_sae_forward_impl.1} parent=43 // pred_region
          _
        $region64: #{_sae_forward_impl.1} parent=43 // pred_fallthru
          _
        // Predicated region
        $region65: #{_sae_forward_impl.1} parent=43 // pred_check
          %p604 = pneg %p230
        $region66: #{_sae_forward_impl.1} parent=43 // pred_check_branch
          %606 = sbr.rel (%p604) target = $region68
        $region67: #{_sae_forward_impl.1} parent=43 // pred_region
          _
        $region68: #{_sae_forward_impl.1} parent=43 // pred_fallthru
          _
      $region44: #{_sae_forward_impl.1} parent=5 // pred_fallthru
        _
      %p607 = scmp.le.s32.totalorder 2, %s16
      // Predicated region
      $region69: #{_sae_forward_impl.1} parent=5 // pred_check
        %p608 = pneg %p607
      $region70: #{_sae_forward_impl.1} parent=5 // pred_check_branch
        %610 = sbr.rel (%p608) target = $region72
      $region71: #{_sae_forward_impl.1} parent=5 // pred_region
        %s611 = ssub.s32 %s16, 2
        // Predicated region
        $region73: #{_sae_forward_impl.1} parent=71 // pred_check
          %p612 = pneg %p208
        $region74: #{_sae_forward_impl.1} parent=71 // pred_check_branch
          %614 = sbr.rel (%p612) target = $region76
        $region75: #{_sae_forward_impl.1} parent=71 // pred_region
          %p615 = scmp.lt.s32.totalorder %s27, 1
          %s616 = scalar_select %p615, %s27, 1
          %s617 = smul.addr %s616, 8
          %s618 = scalar_lea.vmem %s6, %s617
        $region76: #{_sae_forward_impl.1} parent=71 // pred_fallthru
          _
        // Predicated region
        $region77: #{_sae_forward_impl.1} parent=71 // pred_check
          %p619 = pneg %p236
        $region78: #{_sae_forward_impl.1} parent=71 // pred_check_branch
          %621 = sbr.rel (%p619) target = $region80
        $region79: #{_sae_forward_impl.1} parent=71 // pred_region
          %p622 = scmp.lt.s32.totalorder %s27, 1
          %s623 = scalar_select %p622, %s27, 1
          %p624 = scmp.lt.s32.totalorder %s28, 0
          %s625 = scalar_select %p624, %s28, 0
          %s626 = sadd.s32 %s625, %s623
          %s627 = smul.addr %s626, 8
          %s628 = scalar_lea.vmem %s7, %s627
        $region80: #{_sae_forward_impl.1} parent=71 // pred_fallthru
          _
      $region72: #{_sae_forward_impl.1} parent=5 // pred_fallthru
        _
    $region6: #{_sae_forward_impl.1} parent=1 // loop_footer
      %s20 = sadd.s32 1, %s16
    $region7: #{_sae_forward_impl.1} parent=1 // loop_footer_branch
      %15 = sbr.rel target = $region3
    $region8: #{_sae_forward_impl.1} parent=1 // loop_exit
      _
    %629 = vsyncpa [#allocation3], 1
    %s630 = scalar_lea.sflag [#allocation3], 1
    %631 = vsyncpa %s630, 1
    %632 = vsyncpa [#allocation5], 1

</llo_original>
